<compile_context>
chip_gen: v5e
topology: v5e:2x2
jax: 0.10.0
libtpu: 0.0.40
codegen_flags: <defaults>
</compile_context>

<pallas_src>
import functools

import jax
import jax.numpy as jnp
from jax.experimental import pallas as pl
from jax.experimental.pallas import tpu as pltpu


# ----------------------------------------------------------------------------
# Kernel 1: fused elementwise (1 + s) on both (B, B) matrices.
# Two inputs, two outputs, one pallas_call; grid tiles rows (pipelined).
# ----------------------------------------------------------------------------
def _add_one_kernel(s1_ref, s2_ref, o1_ref, o2_ref):
    # Upcast happens in-kernel (free on the VPU); output is always f32.
    o1_ref[...] = s1_ref[...].astype(jnp.float32) + 1.0
    o2_ref[...] = s2_ref[...].astype(jnp.float32) + 1.0


def _row_tile(B, in_itemsize, budget_bytes=12 << 20):
    """Largest row tile (multiple of 8, <= 512) whose per-step VMEM footprint
    (2 inputs + 2 f32 outputs, double-buffered) stays under `budget_bytes`."""
    per_row_bytes = 2 * B * (2 * in_itemsize + 2 * 4)  # double-buffer * (in1+in2+out1+out2)
    tr = budget_bytes // per_row_bytes
    tr = max(8, (tr // 8) * 8)
    # TODO(synk): for extreme B (>~64k) also tile columns to keep the 8-row floor cheap.
    return int(min(B, 512, tr))


def add_one_pair(s1, s2):
    """Returns (1 + s1, 1 + s2) as float32, computed in a single Pallas kernel."""
    B = s1.shape[-1]
    in_dtype = jnp.dtype(s1.dtype)
    tr = _row_tile(B, in_dtype.itemsize)
    n_tiles = pl.cdiv(B, tr)  # ragged last tile handled by Pallas

    # Donate the input buffers (they are dead after this call) when shapes/dtypes match.
    aliases = {0: 0, 1: 1} if in_dtype == jnp.dtype(jnp.float32) else {}

    return pl.pallas_call(
        _add_one_kernel,
        out_shape=(jax.ShapeDtypeStruct((B, B), jnp.float32),
                   jax.ShapeDtypeStruct((B, B), jnp.float32)),
        grid=(n_tiles,),
        in_specs=[pl.BlockSpec((tr, B), lambda r: (r, 0)),
                  pl.BlockSpec((tr, B), lambda r: (r, 0))],
        out_specs=(pl.BlockSpec((tr, B), lambda r: (r, 0)),
                   pl.BlockSpec((tr, B), lambda r: (r, 0))),
        input_output_aliases=aliases,
        compiler_params=pltpu.CompilerParams(
            dimension_semantics=("parallel",)),
    )(s1, s2)


# ----------------------------------------------------------------------------
# Kernel 2: normalized scalar product of the two (ascending) eigenvalue vectors.
#   out = sum(e1 * e2) / (B * (B - 1))
# Inputs are full (1, B) blocks (full-extent last dim; masked lanes are fine).
# Scalar result goes to SMEM.
# ----------------------------------------------------------------------------
def _eig_dot_kernel(e1_ref, e2_ref, o_ref, *, norm_b):
    prod = e1_ref[...].astype(jnp.float32) * e2_ref[...].astype(jnp.float32)
    # norm_b is a baked constant; norm_b == 0 (B == 1) yields inf/nan at runtime,
    # matching the reference, with no trace-time ZeroDivisionError.
    o_ref[0, 0] = jnp.sum(prod) / norm_b


def qare_dot(e1, e2, norm_b):
    B = e1.shape[-1]
    e1 = e1.reshape(1, B)
    e2 = e2.reshape(1, B)
    out = pl.pallas_call(
        functools.partial(_eig_dot_kernel, norm_b=float(norm_b)),
        out_shape=jax.ShapeDtypeStruct((1, 1), jnp.float32),
        in_specs=[pl.BlockSpec((1, B), lambda: (0, 0)),
                  pl.BlockSpec((1, B), lambda: (0, 0))],
        out_specs=pl.BlockSpec(memory_space=pltpu.MemorySpace.SMEM),
    )(e1, e2)
    return out[0, 0]


# ----------------------------------------------------------------------------
# QARe forward.
# ----------------------------------------------------------------------------
def qare_forward(s1, s2, gt=None, *, use_pallas=None):
    # `gt` defaults to eye(B) in the reference but never affects the output.
    B = s1.shape[-1]
    norm_b = float(B * (B - 1))

    if use_pallas is None:
        # Review: for small/typical B the wall clock is dominated by the O(B^3)
        # eigendecomposition; letting XLA fuse the +1 and the dot avoids two tiny
        # custom-call launches and their HBM round trips.
        use_pallas = B > 1024

    if not use_pallas:
        e1 = jnp.linalg.eigvalsh(1.0 + s1.astype(jnp.float32))
        e2 = jnp.linalg.eigvalsh(1.0 + s2.astype(jnp.float32))
        return jnp.dot(e1, e2) / norm_b

    s1p, s2p = add_one_pair(s1, s2)            # Pallas: fused 1 + s1 / 1 + s2

    # TODO(synk): symmetric eigendecomposition (torch.symeig) has no clean Pallas
    # equivalent; eigvalsh already returns ascending eigenvalues (== sorted).
    e1 = jnp.linalg.eigvalsh(s1p)              # (B,)
    e2 = jnp.linalg.eigvalsh(s2p)              # (B,)

    return qare_dot(e1, e2, norm_b)            # Pallas: dot + normalization


# ----------------------------------------------------------------------------
# Pure-JAX reference for a sanity check.
# ----------------------------------------------------------------------------
def qare_reference(s1, s2):
    B = s1.shape[-1]
    e1 = jnp.linalg.eigvalsh(1.0 + s1)
    e2 = jnp.linalg.eigvalsh(1.0 + s2)
    return jnp.dot(e1, e2) / (B * (B - 1))


if __name__ == "__main__":
    key = jax.random.PRNGKey(0)
    k1, k2 = jax.random.split(key)

    B = 16  # similarity-matrix / batch size
    a1 = jax.random.normal(k1, (B, B), dtype=jnp.float32)
    a2 = jax.random.normal(k2, (B, B), dtype=jnp.float32)
    s1 = 0.5 * (a1 + a1.T)  # symmetric similarity matrices
    s2 = 0.5 * (a2 + a2.T)

    fwd = jax.jit(lambda x, y: qare_forward(x, y, use_pallas=True))
    out = jax.block_until_ready(fwd(s1, s2))
    ref = jax.block_until_ready(qare_reference(s1, s2))
    assert jnp.allclose(out, ref, rtol=1e-5, atol=1e-5), (out, ref)

    print("KERNEL_OK")
</pallas_src>

<mosaic_0001>
module attributes {stable_mosaic.version = 11 : i64} {
  func.func @_add_one_kernel(%arg0: i32, %arg1: memref<16x16xf32, #tpu.memory_space<vmem>>, %arg2: memref<16x16xf32, #tpu.memory_space<vmem>>, %arg3: memref<16x16xf32, #tpu.memory_space<vmem>>, %arg4: memref<16x16xf32, #tpu.memory_space<vmem>>) attributes {dimension_semantics = [#tpu.dimension_semantics<parallel>], iteration_bounds = array<i64: 1>, scalar_prefetch = 0 : i64, scratch_operands = 0 : i64, tpu.core_type = #tpu.core_type<tc>, window_params = [{transform_indices = @transform_0, window_bounds = array<i64: 16, 16>}, {transform_indices = @transform_1, window_bounds = array<i64: 16, 16>}, {transform_indices = @transform_2, window_bounds = array<i64: 16, 16>}, {transform_indices = @transform_3, window_bounds = array<i64: 16, 16>}]} {
    %c0 = arith.constant 0 : index
    %c0_0 = arith.constant 0 : index
    %0 = vector.load %arg1[%c0, %c0_0] : memref<16x16xf32, #tpu.memory_space<vmem>>, vector<16x16xf32>
    %cst = arith.constant 1.000000e+00 : f32
    %1 = vector.broadcast %cst : f32 to vector<16x16xf32>
    %2 = arith.addf %0, %1 : vector<16x16xf32>
    %c0_1 = arith.constant 0 : index
    %c0_2 = arith.constant 0 : index
    %3 = vector.load %arg3[%c0_1, %c0_2] : memref<16x16xf32, #tpu.memory_space<vmem>>, vector<16x16xf32>
    tpu.vector_store %arg3[%c0_1, %c0_2], %2 {strides = array<i32>} : memref<16x16xf32, #tpu.memory_space<vmem>>, vector<16x16xf32>,
    %c0_3 = arith.constant 0 : index
    %c0_4 = arith.constant 0 : index
    %4 = vector.load %arg2[%c0_3, %c0_4] : memref<16x16xf32, #tpu.memory_space<vmem>>, vector<16x16xf32>
    %cst_5 = arith.constant 1.000000e+00 : f32
    %5 = vector.broadcast %cst_5 : f32 to vector<16x16xf32>
    %6 = arith.addf %4, %5 : vector<16x16xf32>
    %c0_6 = arith.constant 0 : index
    %c0_7 = arith.constant 0 : index
    %7 = vector.load %arg4[%c0_6, %c0_7] : memref<16x16xf32, #tpu.memory_space<vmem>>, vector<16x16xf32>
    tpu.vector_store %arg4[%c0_6, %c0_7], %6 {strides = array<i32>} : memref<16x16xf32, #tpu.memory_space<vmem>>, vector<16x16xf32>,
    return
  }
  func.func @transform_0(%arg0: i32) -> (i32, i32) {
    %c0_i32 = arith.constant 0 : i32
    %c0_i32_0 = arith.constant 0 : i32
    return %arg0, %c0_i32 : i32, i32
  }
  func.func @transform_1(%arg0: i32) -> (i32, i32) {
    %c0_i32 = arith.constant 0 : i32
    %c0_i32_0 = arith.constant 0 : i32
    return %arg0, %c0_i32 : i32, i32
  }
  func.func @transform_2(%arg0: i32) -> (i32, i32) {
    %c0_i32 = arith.constant 0 : i32
    %c0_i32_0 = arith.constant 0 : i32
    return %arg0, %c0_i32 : i32, i32
  }
  func.func @transform_3(%arg0: i32) -> (i32, i32) {
    %c0_i32 = arith.constant 0 : i32
    %c0_i32_0 = arith.constant 0 : i32
    return %arg0, %c0_i32 : i32, i32
  }
}

module attributes {stable_mosaic.version = 11 : i64} {
  func.func @_eig_dot_kernel(%arg0: memref<1x16xf32, #tpu.memory_space<vmem>>, %arg1: memref<1x16xf32, #tpu.memory_space<vmem>>, %arg2: memref<1x1xf32, #tpu.memory_space<smem>>) attributes {dimension_semantics = [], scalar_prefetch = 0 : i64, scratch_operands = 0 : i64, tpu.core_type = #tpu.core_type<tc>} {
    %c0 = arith.constant 0 : index
    %c0_0 = arith.constant 0 : index
    %0 = vector.load %arg0[%c0, %c0_0] : memref<1x16xf32, #tpu.memory_space<vmem>>, vector<1x16xf32>
    %c0_1 = arith.constant 0 : index
    %c0_2 = arith.constant 0 : index
    %1 = vector.load %arg1[%c0_1, %c0_2] : memref<1x16xf32, #tpu.memory_space<vmem>>, vector<1x16xf32>
    %2 = arith.mulf %0, %1 : vector<1x16xf32>
    %3 = vector.shape_cast %2 : vector<1x16xf32> to vector<1x1x16xf32>
    %cst = arith.constant dense<0.000000e+00> : vector<1xf32>
    %4 = vector.multi_reduction <add>, %3, %cst [1, 2] : vector<1x1x16xf32> to vector<1xf32>
    %5 = vector.shape_cast %4 : vector<1xf32> to vector<1x1x1xf32>
    %6 = vector.extract %5[0, 0, 0] : f32 from vector<1x1x1xf32>
    %cst_3 = arith.constant 2.400000e+02 : f32
    %7 = arith.divf %6, %cst_3 : f32
    %c0_4 = arith.constant 0 : index
    %c0_5 = arith.constant 0 : index
    %8 = memref.load %arg2[%c0_4, %c0_5] : memref<1x1xf32, #tpu.memory_space<smem>>
    memref.store %7, %arg2[%c0_4, %c0_5] : memref<1x1xf32, #tpu.memory_space<smem>>
    return
  }
}

</mosaic_0001>

<llo_original>
// kernel: custom-call.5
$region0: #{custom-call.5}
  %s0 = inlined_call_operand.vmem [shape: f32[8,8], index: 0, kind: input, shape index: {}]
  %s1 = inlined_call_operand.vmem [shape: f32[8,8], index: 1, kind: input, shape index: {}]
  %s2 = inlined_call_operand.vmem [shape: f32[8,8], index: 2, kind: input, shape index: {}]
  %s3 = inlined_call_operand.vmem [shape: f32[8,8], index: 3, kind: input, shape index: {}]
  %s4 = inlined_call_operand.vmem [shape: f32[8], index: 4, kind: output, shape index: {0}]
  %s5 = inlined_call_operand.vmem [shape: f32[8], index: 5, kind: output, shape index: {1}]
  %s6 = inlined_call_operand.hbm [shape: f32[8,8], index: 6, kind: output, shape index: {2}]
  %s7 = inlined_call_operand.hbm [shape: f32[8,8], index: 7, kind: output, shape index: {3}]
  %s8 = inlined_call_operand.hbm [shape: f32[8,8], index: 8, kind: output, shape index: {4}]
  %s9 = inlined_call_operand.hbm [shape: f32[8,8], index: 9, kind: output, shape index: {5}]
  %10 = xla_tuple %s4, %s5, %s6, %s7, %s8, %s9
  $region1: #{custom-call.5} parent=0
    #allocation0 [shape = 'u8[4096]{0}', space=vmem, size = 0x1000, scoped, tag = 'operand span for operand 0']
    #allocation1 [shape = 'u8[4096]{0}', space=vmem, size = 0x1000, scoped, tag = 'operand span for operand 1']
    #allocation2 [shape = 'u8[4096]{0}', space=vmem, size = 0x1000, scoped, tag = 'operand span for operand 2']
    #allocation3 [shape = 'u8[4096]{0}', space=vmem, size = 0x1000, scoped, tag = 'operand span for operand 3']
    #allocation4 [shape = 'u8[4096]{0}', space=vmem, size = 0x1000, scoped, tag = 'operand span for operand 4']
    #allocation5 [shape = 'u8[512]{0}', space=vmem, size = 0x400, scoped, tag = 'packed  for operand 4']
    #allocation6 [shape = 'u8[4096]{0}', space=vmem, size = 0x1000, scoped, tag = 'operand span for operand 5']
    #allocation7 [shape = 'u8[512]{0}', space=vmem, size = 0x400, scoped, tag = 'packed  for operand 5']
    #allocation8 [shape = 'u8[4096]{0}', space=vmem, size = 0x1000, scoped, tag = 'operand span for operand 6']
    #allocation9 [shape = 's32[1]{0}', space=sflag, size = 0x4, scoped, tag = 'scoped memory for custom-call.5']
    #allocation10 [shape = 'u8[4096]{0}', space=vmem, size = 0x1000, scoped, tag = 'operand span for operand 7']
    #allocation11 [shape = 's32[1]{0}', space=sflag, size = 0x4, scoped, tag = 'scoped memory for custom-call.5']
    #allocation12 [shape = 'u8[4096]{0}', space=vmem, size = 0x1000, scoped, tag = 'operand span for operand 8']
    #allocation13 [shape = 'u8[4096]{0}', space=vmem, size = 0x1000, scoped, tag = 'operand span for operand 9']
    #allocation14 [shape = 's32[1]{0}', space=sflag, size = 0x4, scoped, tag = 'scoped memory for custom-call.5']
    #allocation15 [shape = 'f32[8,8]{1,0}', space=vmem, size = 0x1000, scoped, tag = 'a top-left matrix']
    #allocation16 [shape = 'f32[8,8]{1,0}', space=vmem, size = 0x1000, scoped, tag = 'a top-right matrix']
    #allocation17 [shape = 'f32[8,8]{1,0}', space=vmem, size = 0x1000, scoped, tag = 'a bottom-left matrix']
    #allocation18 [shape = 'f32[8,8]{1,0}', space=vmem, size = 0x1000, scoped, tag = 'a bottom-right matrix']
    %11 = vsyncpa [#allocation9], 0
    %12 = vsyncpa [#allocation11], 0
    %13 = vsyncpa [#allocation14], 0
    // Predicated region
    $region2: #{custom-call.5} parent=1 // pred_check
      _
    $region3: #{custom-call.5} parent=1 // pred_check_branch
      %15 = sbr.rel (0) target = $region5
    $region4: #{custom-call.5} parent=1 // pred_region
      %p17 = scmp.gt.s32.totalorder 1, 0
      // Predicated region
      $region6: #{custom-call.5} parent=4 // pred_check
        %p18 = pneg %p17
      $region7: #{custom-call.5} parent=4 // pred_check_branch
        %20 = sbr.rel (%p18) target = $region9
      $region8: #{custom-call.5} parent=4 // pred_region
        %s21 = ssub.s32 1, 1
        %s22 = smul.u32 %s21, 8
        %s23 = scalar_lea.vmem %s0, %s22
        %v24 = vld [vmem:[%s0] sm:$0xff]
        // While loop
        $region10: #{custom-call.5} parent=8 // loop_pre_header
          _
        $region11: #{custom-call.5} parent=8 // loop_header
          %s25 = sphi %s0, %s47
          %s26 = sphi [#allocation0], %s48
          %v27 = vphi %v24, %v49
          %s28 = ssub.s32 %s23, 64
          %p29 = scmp.gt.s32.totalorder %s25, %s28
        $region12: #{custom-call.5} parent=8 // loop_header_branch
          %31 = sbr.rel (%p29) target = $region16
        $region13: #{custom-call.5} parent=8 // loop_body
          %32 = vst [vmem:[%s26] sm:$0xff] %v27
          %v33 = vld [vmem:[%s25 + $0x8] sm:$0xff]
          %34 = vst [vmem:[%s26 + $0x8] sm:$0xff] %v33
          %v35 = vld [vmem:[%s25 + $0x10] sm:$0xff]
          %36 = vst [vmem:[%s26 + $0x10] sm:$0xff] %v35
          %v37 = vld [vmem:[%s25 + $0x18] sm:$0xff]
          %38 = vst [vmem:[%s26 + $0x18] sm:$0xff] %v37
          %v39 = vld [vmem:[%s25 + $0x20] sm:$0xff]
          %40 = vst [vmem:[%s26 + $0x20] sm:$0xff] %v39
          %v41 = vld [vmem:[%s25 + $0x28] sm:$0xff]
          %42 = vst [vmem:[%s26 + $0x28] sm:$0xff] %v41
          %v43 = vld [vmem:[%s25 + $0x30] sm:$0xff]
          %44 = vst [vmem:[%s26 + $0x30] sm:$0xff] %v43
          %v45 = vld [vmem:[%s25 + $0x38] sm:$0xff]
          %46 = vst [vmem:[%s26 + $0x38] sm:$0xff] %v45
        $region14: #{custom-call.5} parent=8 // loop_footer
          %s47 = scalar_lea.vmem %s25, 64
          %s48 = scalar_lea.vmem %s26, 64
          %v49 = vld [vmem:[%s25 + $0x40] sm:$0xff]
        $region15: #{custom-call.5} parent=8 // loop_footer_branch
          %50 = sbr.rel target = $region11
        $region16: #{custom-call.5} parent=8 // loop_exit
          _
        // While loop
        $region17: #{custom-call.5} parent=8 // loop_pre_header
          _
        $region18: #{custom-call.5} parent=8 // loop_header
          %s51 = sphi %s25, %s59
          %s52 = sphi %s26, %s60
          %v53 = vphi %v27, %v53
          %p54 = scmp.gt.s32.totalorder %s51, %s23
        $region19: #{custom-call.5} parent=8 // loop_header_branch
          %56 = sbr.rel (%p54) target = $region23
        $region20: #{custom-call.5} parent=8 // loop_body
          %v57 = vld [vmem:[%s51] sm:$0xff]
          %58 = vst [vmem:[%s52] sm:$0xff] %v57
        $region21: #{custom-call.5} parent=8 // loop_footer
          %s59 = scalar_lea.vmem %s51, 8
          %s60 = scalar_lea.vmem %s52, 8
        $region22: #{custom-call.5} parent=8 // loop_footer_branch
          %61 = sbr.rel target = $region18
        $region23: #{custom-call.5} parent=8 // loop_exit
          _
      $region9: #{custom-call.5} parent=4 // pred_fallthru
        _
      %s63 = ssub.s32 1, 1
      %s64 = smul.u32 1, 8
      %s65 = scalar_lea.vmem [#allocation0], %s64
      %s66 = smul.u32 1, 8
      %s67 = scalar_lea.vmem %s0, %s66
      %v68 = vld [vmem:[%s67] sm:%s63]
      %69 = vst [vmem:[%s65] sm:%s63] %v68
    $region5: #{custom-call.5} parent=1 // pred_fallthru
      _
    // Predicated region
    $region24: #{custom-call.5} parent=1 // pred_check
      _
    $region25: #{custom-call.5} parent=1 // pred_check_branch
      %71 = sbr.rel (0) target = $region27
    $region26: #{custom-call.5} parent=1 // pred_region
      %p73 = scmp.gt.s32.totalorder 1, 0
      // Predicated region
      $region28: #{custom-call.5} parent=26 // pred_check
        %p74 = pneg %p73
      $region29: #{custom-call.5} parent=26 // pred_check_branch
        %76 = sbr.rel (%p74) target = $region31
      $region30: #{custom-call.5} parent=26 // pred_region
        %s77 = ssub.s32 1, 1
        %s78 = smul.u32 %s77, 8
        %s79 = scalar_lea.vmem %s1, %s78
        %v80 = vld [vmem:[%s1] sm:$0xff]
        // While loop
        $region32: #{custom-call.5} parent=30 // loop_pre_header
          _
        $region33: #{custom-call.5} parent=30 // loop_header
          %s81 = sphi %s1, %s103
          %s82 = sphi [#allocation1], %s104
          %v83 = vphi %v80, %v105
          %s84 = ssub.s32 %s79, 64
          %p85 = scmp.gt.s32.totalorder %s81, %s84
        $region34: #{custom-call.5} parent=30 // loop_header_branch
          %87 = sbr.rel (%p85) target = $region38
        $region35: #{custom-call.5} parent=30 // loop_body
          %88 = vst [vmem:[%s82] sm:$0xff] %v83
          %v89 = vld [vmem:[%s81 + $0x8] sm:$0xff]
          %90 = vst [vmem:[%s82 + $0x8] sm:$0xff] %v89
          %v91 = vld [vmem:[%s81 + $0x10] sm:$0xff]
          %92 = vst [vmem:[%s82 + $0x10] sm:$0xff] %v91
          %v93 = vld [vmem:[%s81 + $0x18] sm:$0xff]
          %94 = vst [vmem:[%s82 + $0x18] sm:$0xff] %v93
          %v95 = vld [vmem:[%s81 + $0x20] sm:$0xff]
          %96 = vst [vmem:[%s82 + $0x20] sm:$0xff] %v95
          %v97 = vld [vmem:[%s81 + $0x28] sm:$0xff]
          %98 = vst [vmem:[%s82 + $0x28] sm:$0xff] %v97
          %v99 = vld [vmem:[%s81 + $0x30] sm:$0xff]
          %100 = vst [vmem:[%s82 + $0x30] sm:$0xff] %v99
          %v101 = vld [vmem:[%s81 + $0x38] sm:$0xff]
          %102 = vst [vmem:[%s82 + $0x38] sm:$0xff] %v101
        $region36: #{custom-call.5} parent=30 // loop_footer
          %s103 = scalar_lea.vmem %s81, 64
          %s104 = scalar_lea.vmem %s82, 64
          %v105 = vld [vmem:[%s81 + $0x40] sm:$0xff]
        $region37: #{custom-call.5} parent=30 // loop_footer_branch
          %106 = sbr.rel target = $region33
        $region38: #{custom-call.5} parent=30 // loop_exit
          _
        // While loop
        $region39: #{custom-call.5} parent=30 // loop_pre_header
          _
        $region40: #{custom-call.5} parent=30 // loop_header
          %s107 = sphi %s81, %s115
          %s108 = sphi %s82, %s116
          %v109 = vphi %v83, %v109
          %p110 = scmp.gt.s32.totalorder %s107, %s79
        $region41: #{custom-call.5} parent=30 // loop_header_branch
          %112 = sbr.rel (%p110) target = $region45
        $region42: #{custom-call.5} parent=30 // loop_body
          %v113 = vld [vmem:[%s107] sm:$0xff]
          %114 = vst [vmem:[%s108] sm:$0xff] %v113
        $region43: #{custom-call.5} parent=30 // loop_footer
          %s115 = scalar_lea.vmem %s107, 8
          %s116 = scalar_lea.vmem %s108, 8
        $region44: #{custom-call.5} parent=30 // loop_footer_branch
          %117 = sbr.rel target = $region40
        $region45: #{custom-call.5} parent=30 // loop_exit
          _
      $region31: #{custom-call.5} parent=26 // pred_fallthru
        _
      %s119 = ssub.s32 1, 1
      %s120 = smul.u32 1, 8
      %s121 = scalar_lea.vmem [#allocation1], %s120
      %s122 = smul.u32 1, 8
      %s123 = scalar_lea.vmem %s1, %s122
      %v124 = vld [vmem:[%s123] sm:%s119]
      %125 = vst [vmem:[%s121] sm:%s119] %v124
    $region27: #{custom-call.5} parent=1 // pred_fallthru
      _
    // Predicated region
    $region46: #{custom-call.5} parent=1 // pred_check
      _
    $region47: #{custom-call.5} parent=1 // pred_check_branch
      %127 = sbr.rel (0) target = $region49
    $region48: #{custom-call.5} parent=1 // pred_region
      %p129 = scmp.gt.s32.totalorder 1, 0
      // Predicated region
      $region50: #{custom-call.5} parent=48 // pred_check
        %p130 = pneg %p129
      $region51: #{custom-call.5} parent=48 // pred_check_branch
        %132 = sbr.rel (%p130) target = $region53
      $region52: #{custom-call.5} parent=48 // pred_region
        %s133 = ssub.s32 1, 1
        %s134 = smul.u32 %s133, 8
        %s135 = scalar_lea.vmem %s2, %s134
        %v136 = vld [vmem:[%s2] sm:$0xff]
        // While loop
        $region54: #{custom-call.5} parent=52 // loop_pre_header
          _
        $region55: #{custom-call.5} parent=52 // loop_header
          %s137 = sphi %s2, %s159
          %s138 = sphi [#allocation2], %s160
          %v139 = vphi %v136, %v161
          %s140 = ssub.s32 %s135, 64
          %p141 = scmp.gt.s32.totalorder %s137, %s140
        $region56: #{custom-call.5} parent=52 // loop_header_branch
          %143 = sbr.rel (%p141) target = $region60
        $region57: #{custom-call.5} parent=52 // loop_body
          %144 = vst [vmem:[%s138] sm:$0xff] %v139
          %v145 = vld [vmem:[%s137 + $0x8] sm:$0xff]
          %146 = vst [vmem:[%s138 + $0x8] sm:$0xff] %v145
          %v147 = vld [vmem:[%s137 + $0x10] sm:$0xff]
          %148 = vst [vmem:[%s138 + $0x10] sm:$0xff] %v147
          %v149 = vld [vmem:[%s137 + $0x18] sm:$0xff]
          %150 = vst [vmem:[%s138 + $0x18] sm:$0xff] %v149
          %v151 = vld [vmem:[%s137 + $0x20] sm:$0xff]
          %152 = vst [vmem:[%s138 + $0x20] sm:$0xff] %v151
          %v153 = vld [vmem:[%s137 + $0x28] sm:$0xff]
          %154 = vst [vmem:[%s138 + $0x28] sm:$0xff] %v153
          %v155 = vld [vmem:[%s137 + $0x30] sm:$0xff]
          %156 = vst [vmem:[%s138 + $0x30] sm:$0xff] %v155
          %v157 = vld [vmem:[%s137 + $0x38] sm:$0xff]
          %158 = vst [vmem:[%s138 + $0x38] sm:$0xff] %v157
        $region58: #{custom-call.5} parent=52 // loop_footer
          %s159 = scalar_lea.vmem %s137, 64
          %s160 = scalar_lea.vmem %s138, 64
          %v161 = vld [vmem:[%s137 + $0x40] sm:$0xff]
        $region59: #{custom-call.5} parent=52 // loop_footer_branch
          %162 = sbr.rel target = $region55
        $region60: #{custom-call.5} parent=52 // loop_exit
          _
        // While loop
        $region61: #{custom-call.5} parent=52 // loop_pre_header
          _
        $region62: #{custom-call.5} parent=52 // loop_header
          %s163 = sphi %s137, %s171
          %s164 = sphi %s138, %s172
          %v165 = vphi %v139, %v165
          %p166 = scmp.gt.s32.totalorder %s163, %s135
        $region63: #{custom-call.5} parent=52 // loop_header_branch
          %168 = sbr.rel (%p166) target = $region67
        $region64: #{custom-call.5} parent=52 // loop_body
          %v169 = vld [vmem:[%s163] sm:$0xff]
          %170 = vst [vmem:[%s164] sm:$0xff] %v169
        $region65: #{custom-call.5} parent=52 // loop_footer
          %s171 = scalar_lea.vmem %s163, 8
          %s172 = scalar_lea.vmem %s164, 8
        $region66: #{custom-call.5} parent=52 // loop_footer_branch
          %173 = sbr.rel target = $region62
        $region67: #{custom-call.5} parent=52 // loop_exit
          _
      $region53: #{custom-call.5} parent=48 // pred_fallthru
        _
      %s175 = ssub.s32 1, 1
      %s176 = smul.u32 1, 8
      %s177 = scalar_lea.vmem [#allocation2], %s176
      %s178 = smul.u32 1, 8
      %s179 = scalar_lea.vmem %s2, %s178
      %v180 = vld [vmem:[%s179] sm:%s175]
      %181 = vst [vmem:[%s177] sm:%s175] %v180
    $region49: #{custom-call.5} parent=1 // pred_fallthru
      _
    // Predicated region
    $region68: #{custom-call.5} parent=1 // pred_check
      _
    $region69: #{custom-call.5} parent=1 // pred_check_branch
      %183 = sbr.rel (0) target = $region71
    $region70: #{custom-call.5} parent=1 // pred_region
      %p185 = scmp.gt.s32.totalorder 1, 0
      // Predicated region
      $region72: #{custom-call.5} parent=70 // pred_check
        %p186 = pneg %p185
      $region73: #{custom-call.5} parent=70 // pred_check_branch
        %188 = sbr.rel (%p186) target = $region75
      $region74: #{custom-call.5} parent=70 // pred_region
        %s189 = ssub.s32 1, 1
        %s190 = smul.u32 %s189, 8
        %s191 = scalar_lea.vmem %s3, %s190
        %v192 = vld [vmem:[%s3] sm:$0xff]
        // While loop
        $region76: #{custom-call.5} parent=74 // loop_pre_header
          _
        $region77: #{custom-call.5} parent=74 // loop_header
          %s193 = sphi %s3, %s215
          %s194 = sphi [#allocation3], %s216
          %v195 = vphi %v192, %v217
          %s196 = ssub.s32 %s191, 64
          %p197 = scmp.gt.s32.totalorder %s193, %s196
        $region78: #{custom-call.5} parent=74 // loop_header_branch
          %199 = sbr.rel (%p197) target = $region82
        $region79: #{custom-call.5} parent=74 // loop_body
          %200 = vst [vmem:[%s194] sm:$0xff] %v195
          %v201 = vld [vmem:[%s193 + $0x8] sm:$0xff]
          %202 = vst [vmem:[%s194 + $0x8] sm:$0xff] %v201
          %v203 = vld [vmem:[%s193 + $0x10] sm:$0xff]
          %204 = vst [vmem:[%s194 + $0x10] sm:$0xff] %v203
          %v205 = vld [vmem:[%s193 + $0x18] sm:$0xff]
          %206 = vst [vmem:[%s194 + $0x18] sm:$0xff] %v205
          %v207 = vld [vmem:[%s193 + $0x20] sm:$0xff]
          %208 = vst [vmem:[%s194 + $0x20] sm:$0xff] %v207
          %v209 = vld [vmem:[%s193 + $0x28] sm:$0xff]
          %210 = vst [vmem:[%s194 + $0x28] sm:$0xff] %v209
          %v211 = vld [vmem:[%s193 + $0x30] sm:$0xff]
          %212 = vst [vmem:[%s194 + $0x30] sm:$0xff] %v211
          %v213 = vld [vmem:[%s193 + $0x38] sm:$0xff]
          %214 = vst [vmem:[%s194 + $0x38] sm:$0xff] %v213
        $region80: #{custom-call.5} parent=74 // loop_footer
          %s215 = scalar_lea.vmem %s193, 64
          %s216 = scalar_lea.vmem %s194, 64
          %v217 = vld [vmem:[%s193 + $0x40] sm:$0xff]
        $region81: #{custom-call.5} parent=74 // loop_footer_branch
          %218 = sbr.rel target = $region77
        $region82: #{custom-call.5} parent=74 // loop_exit
          _
        // While loop
        $region83: #{custom-call.5} parent=74 // loop_pre_header
          _
        $region84: #{custom-call.5} parent=74 // loop_header
          %s219 = sphi %s193, %s227
          %s220 = sphi %s194, %s228
          %v221 = vphi %v195, %v221
          %p222 = scmp.gt.s32.totalorder %s219, %s191
        $region85: #{custom-call.5} parent=74 // loop_header_branch
          %224 = sbr.rel (%p222) target = $region89
        $region86: #{custom-call.5} parent=74 // loop_body
          %v225 = vld [vmem:[%s219] sm:$0xff]
          %226 = vst [vmem:[%s220] sm:$0xff] %v225
        $region87: #{custom-call.5} parent=74 // loop_footer
          %s227 = scalar_lea.vmem %s219, 8
          %s228 = scalar_lea.vmem %s220, 8
        $region88: #{custom-call.5} parent=74 // loop_footer_branch
          %229 = sbr.rel target = $region84
        $region89: #{custom-call.5} parent=74 // loop_exit
          _
      $region75: #{custom-call.5} parent=70 // pred_fallthru
        _
      %s231 = ssub.s32 1, 1
      %s232 = smul.u32 1, 8
      %s233 = scalar_lea.vmem [#allocation3], %s232
      %s234 = smul.u32 1, 8
      %s235 = scalar_lea.vmem %s3, %s234
      %v236 = vld [vmem:[%s235] sm:%s231]
      %237 = vst [vmem:[%s233] sm:%s231] %v236
    $region71: #{custom-call.5} parent=1 // pred_fallthru
      _
    %s238 = smov [#allocation15]
    %v239 = vld [vmem:[#allocation0] sm:$0xff]
    %240 = vst [vmem:[%s238] sm:$0xff] %v239
    %s241 = smov [#allocation16]
    %v242 = vld [vmem:[#allocation1] sm:$0xff]
    %243 = vst [vmem:[%s241] sm:$0xff] %v242
    %s244 = smov [#allocation17]
    %v245 = vld [vmem:[#allocation2] sm:$0xff]
    %246 = vst [vmem:[%s244] sm:$0xff] %v245
    %s247 = smov [#allocation18]
    %v248 = vld [vmem:[#allocation3] sm:$0xff]
    %249 = vst [vmem:[%s247] sm:$0xff] %v248
    %250 = vst [vmem:[#allocation8] sm:$0xff] 0.0
    %251 = vst [vmem:[#allocation10] sm:$0xff] 0.0
    %252 = vst [vmem:[#allocation12] sm:$0xff] 0.0
    %253 = vst [vmem:[#allocation13] sm:$0xff] 0.0
    %s254 = smov [#allocation8]
    %v255 = vlaneseq
    %v256 = vand.u32 %v255, 127
    %v257 = vmov %v256
    %v258 = vlaneseq
    %v259 = vshrl.u32 %v258, 7
    %v260 = vmov %v259
    %v261 = vld [vmem:[%s254] sm:$0xff]
    %vm264 = vcmp.eq.s32.totalorder %v260, %v257
    %v265 = vsel %vm264, 1.0, %v261
    %266 = vst [vmem:[%s254] sm:$0xff] %v265
    %s267 = smov [#allocation13]
    %v268 = vlaneseq
    %v269 = vand.u32 %v268, 127
    %v270 = vmov %v269
    %v271 = vlaneseq
    %v272 = vshrl.u32 %v271, 7
    %v273 = vmov %v272
    %v274 = vld [vmem:[%s267] sm:$0xff]
    %vm277 = vcmp.eq.s32.totalorder %v273, %v270
    %v278 = vsel %vm277, 1.0, %v274
    %279 = vst [vmem:[%s267] sm:$0xff] %v278
    // While loop
    $region90: #{custom-call.5} parent=1 // loop_pre_header
      _
    $region91: #{custom-call.5} parent=1 // loop_header
      %s281 = sphi 0, %s863
      %v282 = vlaneseq
      %v283 = vand.u32 %v282, 127
      %v284 = vmov %v283
      %v285 = vlaneseq
      %v286 = vshrl.u32 %v285, 7
      %v287 = vmov %v286
      %s288 = smov [#allocation15]
      %v289 = vlaneseq
      %v290 = vand.u32 %v289, 127
      %vm291 = vcmp.ge.s32.totalorder %v290, 0
      %vm292 = vcmp.lt.s32.totalorder %v290, 8
      %vm293 = vmand %vm291, %vm292
      %v294 = vld [vmem:[%s288] sm:$0xff]
      %v295 = vsel %vm293, %v294, 0.0
      %v296 = vmul.f32 %v295, %v295
      %vm299 = vcmp.eq.s32.totalorder %v287, %v284
      %v300 = vsel %vm299, 0.0, %v296
      %v301 = vlaneseq
      %v302 = vand.u32 %v301, 127
      %v303 = vmov %v302
      %v304 = vlaneseq
      %v305 = vshrl.u32 %v304, 7
      %v306 = vmov %v305
      %s307 = smov [#allocation16]
      %v308 = vlaneseq
      %v309 = vand.u32 %v308, 127
      %vm310 = vcmp.ge.s32.totalorder %v309, 0
      %vm311 = vcmp.lt.s32.totalorder %v309, 8
      %vm312 = vmand %vm310, %vm311
      %v313 = vld [vmem:[%s307] sm:$0xff]
      %v314 = vsel %vm312, %v313, 0.0
      %v315 = vmul.f32 %v314, %v314
      %v316 = vadd.f32 %v300, %v315
      %v317 = vadd.f32 %v296, %v315
      %v318 = vlaneseq
      %v319 = vand.u32 %v318, 127
      %v320 = vmov %v319
      %v321 = vlaneseq
      %v322 = vshrl.u32 %v321, 7
      %v323 = vmov %v322
      %s324 = smov [#allocation17]
      %v325 = vlaneseq
      %v326 = vand.u32 %v325, 127
      %vm327 = vcmp.ge.s32.totalorder %v326, 0
      %vm328 = vcmp.lt.s32.totalorder %v326, 8
      %vm329 = vmand %vm327, %vm328
      %v330 = vld [vmem:[%s324] sm:$0xff]
      %v331 = vsel %vm329, %v330, 0.0
      %v332 = vmul.f32 %v331, %v331
      %v333 = vadd.f32 %v316, %v332
      %v334 = vadd.f32 %v317, %v332
      %v335 = vlaneseq
      %v336 = vand.u32 %v335, 127
      %v337 = vmov %v336
      %v338 = vlaneseq
      %v339 = vshrl.u32 %v338, 7
      %v340 = vmov %v339
      %s341 = smov [#allocation18]
      %v342 = vlaneseq
      %v343 = vand.u32 %v342, 127
      %vm344 = vcmp.ge.s32.totalorder %v343, 0
      %vm345 = vcmp.lt.s32.totalorder %v343, 8
      %vm346 = vmand %vm344, %vm345
      %v347 = vld [vmem:[%s341] sm:$0xff]
      %v348 = vsel %vm346, %v347, 0.0
      %v349 = vmul.f32 %v348, %v348
      %vm352 = vcmp.eq.s32.totalorder %v340, %v337
      %v353 = vsel %vm352, 0.0, %v349
      %v354 = vadd.f32 %v333, %v353
      %v355 = vadd.f32 %v334, %v349
      %356 = vadd.xlane.f32.xlu0 %v355
      %v357 = vpop.xlane.xlu0 %356
      %v358 = vrot.slane %v357, 4
      %v359 = vadd.f32 %v357, %v358
      %v360 = vrot.slane %v359, 2
      %v361 = vadd.f32 %v359, %v360
      %v362 = vrot.slane %v361, 1
      %v363 = vadd.f32 %v361, %v362
      %364 = vadd.xlane.f32.xlu0 %v354
      %v365 = vpop.xlane.xlu0 %364
      %v366 = vrot.slane %v365, 4
      %v367 = vadd.f32 %v365, %v366
      %v368 = vrot.slane %v367, 2
      %v369 = vadd.f32 %v367, %v368
      %v370 = vrot.slane %v369, 1
      %v371 = vadd.f32 %v369, %v370
      %s372 = vtos %v371
      %s373 = vtos %v363
      %s374 = smul.f32 1e-10, %s373
      %p375 = scmp.le.f32.partialorder %s372, %s374
      %p376 = scmp.ge.s32.totalorder %s281, 15
      %p377 = por %p375, %p376
    $region92: #{custom-call.5} parent=1 // loop_header_branch
      %865 = sbr.rel (%p377) target = $region96
    $region93: #{custom-call.5} parent=1 // loop_body
      loop: start=0, step=1, limit=15
      $region97: #{custom-call.5} parent=93 // loop_pre_header
        _
      $region98: #{custom-call.5} parent=93 // loop_header
        %s379 = sphi 0, %s383
        %p380 = scmp.ge.s32.totalorder %s379, 15
      $region99: #{custom-call.5} parent=93 // loop_header_branch
        %382 = sbr.rel (%p380) target = $region103
      $region100: #{custom-call.5} parent=93 // loop_body
        #allocation19 [shape = 'f32[1024]{0}', space=vmem, size = 0x1000, scoped, tag = 'a_tl_diag vmem']
        #allocation20 [shape = 'f32[1024]{0}', space=vmem, size = 0x1000, scoped, tag = 'a_tr_diag vmem']
        #allocation21 [shape = 'f32[1024]{0}', space=vmem, size = 0x1000, scoped, tag = 'a_br_diag vmem']
        #allocation22 [shape = 'f32[1024]{0}', space=vmem, size = 0x1000, scoped, tag = 'rt1 vmem']
        #allocation23 [shape = 'f32[1024]{0}', space=vmem, size = 0x1000, scoped, tag = 'rt2 vmem']
        #allocation24 [shape = 'f32[1024]{0}', space=vmem, size = 0x1000, scoped, tag = 'c vmem']
        #allocation25 [shape = 'f32[1024]{0}', space=vmem, size = 0x1000, scoped, tag = 's vmem']
        #allocation26 [shape = 'f32[4096]{0}', space=vmem, size = 0x4000, scoped, tag = 'c broadcast']
        #allocation27 [shape = 'f32[4096]{0}', space=vmem, size = 0x4000, scoped, tag = 's broadcast']
        %s384 = smov [#allocation15]
        %s385 = smov [#allocation19]
        %v386 = vlaneseq
        %v387 = vand.u32 %v386, 127
        %v388 = vmov %v387
        %v389 = vlaneseq
        %v390 = vshrl.u32 %v389, 7
        %v391 = vmov %v390
        %v392 = vld [vmem:[%s384] sm:$0xff]
        %vm395 = vcmp.eq.s32.totalorder %v391, %v388
        %v396 = vsel %vm395, %v392, 0.0
        %v397 = vrot.slane %v396, 4
        %v398 = vadd.f32 %v396, %v397
        %v399 = vrot.slane %v398, 2
        %v400 = vadd.f32 %v398, %v399
        %v401 = vrot.slane %v400, 1
        %v402 = vadd.f32 %v400, %v401
        %403 = vst [vmem:[%s385] sm:$0x1] %v402
        %s404 = smov [#allocation16]
        %s405 = smov [#allocation20]
        %v406 = vlaneseq
        %v407 = vand.u32 %v406, 127
        %v408 = vmov %v407
        %v409 = vlaneseq
        %v410 = vshrl.u32 %v409, 7
        %v411 = vmov %v410
        %v412 = vld [vmem:[%s404] sm:$0xff]
        %vm415 = vcmp.eq.s32.totalorder %v411, %v408
        %v416 = vsel %vm415, %v412, 0.0
        %v417 = vrot.slane %v416, 4
        %v418 = vadd.f32 %v416, %v417
        %v419 = vrot.slane %v418, 2
        %v420 = vadd.f32 %v418, %v419
        %v421 = vrot.slane %v420, 1
        %v422 = vadd.f32 %v420, %v421
        %423 = vst [vmem:[%s405] sm:$0x1] %v422
        %s424 = smov [#allocation18]
        %s425 = smov [#allocation21]
        %v426 = vlaneseq
        %v427 = vand.u32 %v426, 127
        %v428 = vmov %v427
        %v429 = vlaneseq
        %v430 = vshrl.u32 %v429, 7
        %v431 = vmov %v430
        %v432 = vld [vmem:[%s424] sm:$0xff]
        %vm435 = vcmp.eq.s32.totalorder %v431, %v428
        %v436 = vsel %vm435, %v432, 0.0
        %v437 = vrot.slane %v436, 4
        %v438 = vadd.f32 %v436, %v437
        %v439 = vrot.slane %v438, 2
        %v440 = vadd.f32 %v438, %v439
        %v441 = vrot.slane %v440, 1
        %v442 = vadd.f32 %v440, %v441
        %443 = vst [vmem:[%s425] sm:$0x1] %v442
        %s444 = smov [#allocation24]
        %s445 = smov [#allocation25]
        %s446 = smov [#allocation19]
        %v447 = vld [vmem:[%s446] sm:$0xff]
        %s448 = smov [#allocation20]
        %v449 = vld [vmem:[%s448] sm:$0xff]
        %s450 = smov [#allocation21]
        %v451 = vld [vmem:[%s450] sm:$0xff]
        %v452 = vsub.f32 %v451, %v447
        %v453 = vmul.f32 2.0, %v449
        %v454 = vrcp.pop %v453
        %v455 = vmul.f32 %v453, %v454
        %v456 = vsub.f32 1.0, %v455
        %v457 = vmul.f32 %v454, %v456
        %v458 = vadd.f32 %v454, %v457
        %vm459 = vweird.f32 %v453
        %vm460 = vweird.f32 %v454
        %vm461 = vmor %vm459, %vm460
        %v462 = vsel %vm461, %v454, %v458
        %v463 = vand.u32 2147483647, %v453
        %vm464 = vcmp.eq.f32.partialorder %v463, 8.507059e+37
        %v465 = vand.u32 %v453, 2147483648
        %v466 = vor.u32 1.1754944e-38, %v465
        %v467 = vsel %vm464, %v466, %v462
        %v468 = vmul.f32 %v452, %v467
        %vm469 = vcmp.ge.f32.partialorder %v468, 0.0
        %v470 = vmul.f32 %v468, %v468
        %v471 = vadd.f32 1.0, %v470
        %v472 = vrsqrt.pop %v471
        %v473 = vmul.f32 %v472, %v471
        %v474 = vmul.f32 %v473, %v472
        %v475 = vmul.f32 0.5, %v474
        %v476 = vsub.f32 1.5, %v475
        %v477 = vmul.f32 %v472, %v476
        %v478 = vmul.f32 %v471, %v477
        %vm479 = vcmp.eq.f32.partialorder %v471, inf
        %v480 = vsel %vm479, %v471, %v478
        %vm481 = vcmp.eq.f32.partialorder %v471, 0.0
        %v482 = vand.u32 %v471, 2147483648
        %v483 = vsel %vm481, %v482, %v480
        %v484 = vxor.u32 %v483, 2147483648
        %v485 = vsel %vm469, %v483, %v484
        %v486 = vadd.f32 %v468, %v485
        %v487 = vrcp.pop %v486
        %v488 = vmul.f32 %v486, %v487
        %v489 = vsub.f32 1.0, %v488
        %v490 = vmul.f32 %v487, %v489
        %v491 = vadd.f32 %v487, %v490
        %vm492 = vweird.f32 %v486
        %vm493 = vweird.f32 %v487
        %vm494 = vmor %vm492, %vm493
        %v495 = vsel %vm494, %v487, %v491
        %v496 = vand.u32 2147483647, %v486
        %vm497 = vcmp.eq.f32.partialorder %v496, 8.507059e+37
        %v498 = vand.u32 %v486, 2147483648
        %v499 = vor.u32 1.1754944e-38, %v498
        %v500 = vsel %vm497, %v499, %v495
        %v501 = vand.u32 2147483647, %v447
        %v502 = vand.u32 2147483647, %v449
        %v503 = vand.u32 2147483647, %v451
        %v504 = vmin.f32 %v501, %v503
        %v505 = vmul.f32 1.1920929e-08, %v504
        %vm506 = vcmp.le.f32.partialorder %v502, %v505
        %v507 = vsel %vm506, 0.0, %v500
        %v508 = vmul.f32 %v507, %v507
        %v509 = vadd.f32 1.0, %v508
        %v510 = vrsqrt.pop %v509
        %v511 = vmul.f32 %v510, %v509
        %v512 = vmul.f32 %v511, %v510
        %v513 = vmul.f32 0.5, %v512
        %v514 = vsub.f32 1.5, %v513
        %v515 = vmul.f32 %v510, %v514
        %vm516 = vweird.f32 %v509
        %vm517 = vweird.f32 %v510
        %vm518 = vmor %vm516, %vm517
        %v519 = vsel %vm518, %v510, %v515
        %v520 = vmul.f32 %v507, %v519
        %v521 = vmul.f32 %v507, %v449
        %v522 = vsub.f32 %v447, %v521
        %v523 = vmul.f32 %v507, %v449
        %v524 = vadd.f32 %v451, %v523
        %s525 = smov [#allocation22]
        %526 = vst [vmem:[%s525] sm:$0xff] %v522
        %s527 = smov [#allocation23]
        %528 = vst [vmem:[%s527] sm:$0xff] %v524
        %s529 = smov %s444
        %530 = vst [vmem:[%s529] sm:$0xff] %v519
        %s531 = smov %s445
        %532 = vst [vmem:[%s531] sm:$0xff] %v520
        %s533 = smov [#allocation24]
        %v534 = vld [vmem:[%s533] ss:$0 sm:$0xff]
        %v535 = vlaneseq
        %v536 = vand.u32 %v535, 127
        %v537 = vmov %v536
        %v538 = vlaneseq
        %v539 = vshrl.u32 %v538, 7
        %v540 = vmov %v539
        %vm542 = vcmp.eq.s32.totalorder %v540, %v537
        %v543 = vsel %vm542, %v534, 0.0
        %544 = vadd.xlane.f32.xlu0 %v543
        %v545 = vpop.xlane.xlu0 %544
        %s546 = smov [#allocation26]
        %547 = vst [vmem:[%s546] sm:$0xff] %v545
        %s548 = smov [#allocation25]
        %v549 = vld [vmem:[%s548] ss:$0 sm:$0xff]
        %v550 = vlaneseq
        %v551 = vand.u32 %v550, 127
        %v552 = vmov %v551
        %v553 = vlaneseq
        %v554 = vshrl.u32 %v553, 7
        %v555 = vmov %v554
        %vm557 = vcmp.eq.s32.totalorder %v555, %v552
        %v558 = vsel %vm557, %v549, 0.0
        %559 = vadd.xlane.f32.xlu0 %v558
        %v560 = vpop.xlane.xlu0 %559
        %s561 = smov [#allocation27]
        %562 = vst [vmem:[%s561] sm:$0xff] %v560
        %s563 = smov [#allocation26]
        %v564 = vld [vmem:[%s563] sm:$0xff]
        %s565 = smov [#allocation27]
        %v566 = vld [vmem:[%s565] sm:$0xff]
        %s567 = smov [#allocation15]
        %s568 = smov [#allocation16]
        %s569 = smov [#allocation17]
        %s570 = smov [#allocation18]
        %v571 = vld [vmem:[%s567] sm:$0xff]
        %v572 = vld [vmem:[%s568] sm:$0xff]
        %v573 = vld [vmem:[%s569] sm:$0xff]
        %v574 = vld [vmem:[%s570] sm:$0xff]
        %v575 = vmul.f32 %v564, %v571
        %v576 = vmul.f32 %v566, %v573
        %v577 = vsub.f32 %v575, %v576
        %v578 = vmul.f32 %v564, %v572
        %v579 = vmul.f32 %v566, %v574
        %v580 = vsub.f32 %v578, %v579
        %v581 = vmul.f32 %v566, %v571
        %v582 = vmul.f32 %v564, %v573
        %v583 = vadd.f32 %v581, %v582
        %v584 = vmul.f32 %v566, %v572
        %v585 = vmul.f32 %v564, %v574
        %v586 = vadd.f32 %v584, %v585
        %587 = vst [vmem:[%s567] sm:$0xff] %v577
        %588 = vst [vmem:[%s568] sm:$0xff] %v580
        %589 = vst [vmem:[%s569] sm:$0xff] %v583
        %590 = vst [vmem:[%s570] sm:$0xff] %v586
        %s591 = smov [#allocation24]
        %v592 = vld [vmem:[%s591] ss:$0 sm:$0xff]
        %s593 = smov [#allocation25]
        %v594 = vld [vmem:[%s593] ss:$0 sm:$0xff]
        %s595 = smov [#allocation15]
        %s596 = smov [#allocation16]
        %s597 = smov [#allocation17]
        %s598 = smov [#allocation18]
        %v599 = vld [vmem:[%s595] sm:$0xff]
        %v600 = vld [vmem:[%s596] sm:$0xff]
        %v601 = vld [vmem:[%s597] sm:$0xff]
        %v602 = vld [vmem:[%s598] sm:$0xff]
        %v603 = vmul.f32 %v592, %v599
        %v604 = vmul.f32 %v594, %v600
        %v605 = vsub.f32 %v603, %v604
        %v606 = vmul.f32 %v594, %v599
        %v607 = vmul.f32 %v592, %v600
        %v608 = vadd.f32 %v606, %v607
        %v609 = vmul.f32 %v592, %v601
        %v610 = vmul.f32 %v594, %v602
        %v611 = vsub.f32 %v609, %v610
        %v612 = vmul.f32 %v594, %v601
        %v613 = vmul.f32 %v592, %v602
        %v614 = vadd.f32 %v612, %v613
        %615 = vst [vmem:[%s595] sm:$0xff] %v605
        %616 = vst [vmem:[%s596] sm:$0xff] %v608
        %617 = vst [vmem:[%s597] sm:$0xff] %v611
        %618 = vst [vmem:[%s598] sm:$0xff] %v614
        %s619 = smov [#allocation15]
        %s620 = smov [#allocation22]
        %v621 = vlaneseq
        %v622 = vand.u32 %v621, 127
        %v623 = vmov %v622
        %v624 = vlaneseq
        %v625 = vshrl.u32 %v624, 7
        %v626 = vmov %v625
        %v627 = vld [vmem:[%s620] ss:$0 sm:$0xff]
        %v628 = vld [vmem:[%s619] sm:$0xff]
        %vm631 = vcmp.eq.s32.totalorder %v626, %v623
        %v632 = vsel %vm631, %v627, %v628
        %633 = vst [vmem:[%s619] sm:$0xff] %v632
        %s634 = smov [#allocation16]
        %v635 = vlaneseq
        %v636 = vand.u32 %v635, 127
        %v637 = vmov %v636
        %v638 = vlaneseq
        %v639 = vshrl.u32 %v638, 7
        %v640 = vmov %v639
        %v641 = vld [vmem:[%s634] sm:$0xff]
        %vm644 = vcmp.eq.s32.totalorder %v640, %v637
        %v645 = vsel %vm644, 0.0, %v641
        %646 = vst [vmem:[%s634] sm:$0xff] %v645
        %s647 = smov [#allocation17]
        %v648 = vlaneseq
        %v649 = vand.u32 %v648, 127
        %v650 = vmov %v649
        %v651 = vlaneseq
        %v652 = vshrl.u32 %v651, 7
        %v653 = vmov %v652
        %v654 = vld [vmem:[%s647] sm:$0xff]
        %vm657 = vcmp.eq.s32.totalorder %v653, %v650
        %v658 = vsel %vm657, 0.0, %v654
        %659 = vst [vmem:[%s647] sm:$0xff] %v658
        %s660 = smov [#allocation18]
        %s661 = smov [#allocation23]
        %v662 = vlaneseq
        %v663 = vand.u32 %v662, 127
        %v664 = vmov %v663
        %v665 = vlaneseq
        %v666 = vshrl.u32 %v665, 7
        %v667 = vmov %v666
        %v668 = vld [vmem:[%s661] ss:$0 sm:$0xff]
        %v669 = vld [vmem:[%s660] sm:$0xff]
        %vm672 = vcmp.eq.s32.totalorder %v667, %v664
        %v673 = vsel %vm672, %v668, %v669
        %674 = vst [vmem:[%s660] sm:$0xff] %v673
        %s675 = smov [#allocation15]
        %s676 = smov [#allocation16]
        %v677 = vld [vmem:[%s676] sm:$0xff]
        %678 = vrot.lane.b32.xlu0 %v677, 1
        %v679 = vpop.permute.xlu0 %678
        %v680 = vld [vmem:[%s675] sm:$0xff]
        %v681 = vld [vmem:[%s675] sm:$0xff]
        %682 = vrot.lane.b32.xlu0 %v681, 1
        %v683 = vpop.permute.xlu0 %682
        %v684 = vlaneseq
        %v685 = vand.u32 %v684, 127
        %vm686 = vcmp.eq.s32.totalorder %v685, 0
        %v687 = vsel %vm686, %v681, %v683
        %v688 = vlaneseq
        %v689 = vand.u32 %v688, 127
        %vm690 = vcmp.eq.s32.totalorder %v689, 1
        %v691 = vsel %vm690, %v679, %v687
        %v692 = vlaneseq
        %v693 = vand.u32 %v692, 127
        %vm694 = vcmp.ge.s32.totalorder %v693, 0
        %vm695 = vcmp.lt.s32.totalorder %v693, 8
        %vm696 = vmand %vm694, %vm695
        %v697 = vsel %vm696, %v691, 0.0
        %v698 = vld [vmem:[%s676] sm:$0xff]
        %699 = vrot.lane.b32.xlu0 %v698, 127
        %v700 = vpop.permute.xlu0 %699
        %v701 = vlaneseq
        %v702 = vand.u32 %v701, 127
        %vm703 = vcmp.eq.s32.totalorder %v702, 7
        %v704 = vsel %vm703, %v680, %v700
        %705 = vst [vmem:[%s675] sm:$0xff] %v697
        %706 = vst [vmem:[%s676] sm:$0xff] %v704
        %s707 = smov [#allocation17]
        %s708 = smov [#allocation18]
        %v709 = vld [vmem:[%s708] sm:$0xff]
        %710 = vrot.lane.b32.xlu0 %v709, 1
        %v711 = vpop.permute.xlu0 %710
        %v712 = vld [vmem:[%s707] sm:$0xff]
        %v713 = vld [vmem:[%s707] sm:$0xff]
        %714 = vrot.lane.b32.xlu0 %v713, 1
        %v715 = vpop.permute.xlu0 %714
        %v716 = vlaneseq
        %v717 = vand.u32 %v716, 127
        %vm718 = vcmp.eq.s32.totalorder %v717, 0
        %v719 = vsel %vm718, %v713, %v715
        %v720 = vlaneseq
        %v721 = vand.u32 %v720, 127
        %vm722 = vcmp.eq.s32.totalorder %v721, 1
        %v723 = vsel %vm722, %v711, %v719
        %v724 = vlaneseq
        %v725 = vand.u32 %v724, 127
        %vm726 = vcmp.ge.s32.totalorder %v725, 0
        %vm727 = vcmp.lt.s32.totalorder %v725, 8
        %vm728 = vmand %vm726, %vm727
        %v729 = vsel %vm728, %v723, 0.0
        %v730 = vld [vmem:[%s708] sm:$0xff]
        %731 = vrot.lane.b32.xlu0 %v730, 127
        %v732 = vpop.permute.xlu0 %731
        %v733 = vlaneseq
        %v734 = vand.u32 %v733, 127
        %vm735 = vcmp.eq.s32.totalorder %v734, 7
        %v736 = vsel %vm735, %v712, %v732
        %737 = vst [vmem:[%s707] sm:$0xff] %v729
        %738 = vst [vmem:[%s708] sm:$0xff] %v736
        %s739 = smov [#allocation15]
        %s740 = smov [#allocation17]
        %v741 = vld [vmem:[%s739] ss:$0 sm:$0xff]
        %s743 = scalar_lea.vmem %s739, 4294967295
        %v744 = vld [vmem:[%s743] sm:$0xfe]
        %v745 = vlaneseq
        %v746 = vshrl.u32 %v745, 7
        %vm747 = vcmp.eq.s32.totalorder %v746, 0
        %v748 = vsel %vm747, %v741, %v744
        %s749 = scalar_lea.vmem %s739, 7
        %v750 = vld [vmem:[%s749] ss:$0 sm:$0xff]
        %751 = vst [vmem:[%s739] sm:$0xff] %v748
        %v752 = vld [vmem:[%s740] ss:$0 sm:$0xff]
        %s753 = scalar_lea.vmem %s739, 1
        %754 = vst [vmem:[%s753] sm:$0x1] %v752
        %s755 = scalar_lea.vmem %s740, 1
        %v756 = vld [vmem:[%s755] sm:$0x7f]
        %v757 = vlaneseq
        %v758 = vshrl.u32 %v757, 7
        %vm759 = vcmp.eq.s32.totalorder %v758, 7
        %v760 = vsel %vm759, %v750, %v756
        %v761 = vld [vmem:[%s740] ss:$0 sm:$0xff]
        %762 = vst [vmem:[%s740] sm:$0xff] %v760
        %s763 = smov [#allocation16]
        %s764 = smov [#allocation18]
        %v765 = vld [vmem:[%s763] ss:$0 sm:$0xff]
        %s767 = scalar_lea.vmem %s763, 4294967295
        %v768 = vld [vmem:[%s767] sm:$0xfe]
        %v769 = vlaneseq
        %v770 = vshrl.u32 %v769, 7
        %vm771 = vcmp.eq.s32.totalorder %v770, 0
        %v772 = vsel %vm771, %v765, %v768
        %s773 = scalar_lea.vmem %s763, 7
        %v774 = vld [vmem:[%s773] ss:$0 sm:$0xff]
        %775 = vst [vmem:[%s763] sm:$0xff] %v772
        %v776 = vld [vmem:[%s764] ss:$0 sm:$0xff]
        %s777 = scalar_lea.vmem %s763, 1
        %778 = vst [vmem:[%s777] sm:$0x1] %v776
        %s779 = scalar_lea.vmem %s764, 1
        %v780 = vld [vmem:[%s779] sm:$0x7f]
        %v781 = vlaneseq
        %v782 = vshrl.u32 %v781, 7
        %vm783 = vcmp.eq.s32.totalorder %v782, 7
        %v784 = vsel %vm783, %v774, %v780
        %v785 = vld [vmem:[%s764] ss:$0 sm:$0xff]
        %786 = vst [vmem:[%s764] sm:$0xff] %v784
        %s787 = smov [#allocation26]
        %v788 = vld [vmem:[%s787] sm:$0xff]
        %s789 = smov [#allocation27]
        %v790 = vld [vmem:[%s789] sm:$0xff]
        %s791 = smov [#allocation8]
        %s792 = smov [#allocation10]
        %s793 = smov [#allocation12]
        %s794 = smov [#allocation13]
        %v795 = vld [vmem:[%s791] sm:$0xff]
        %v796 = vld [vmem:[%s792] sm:$0xff]
        %v797 = vld [vmem:[%s793] sm:$0xff]
        %v798 = vld [vmem:[%s794] sm:$0xff]
        %v799 = vmul.f32 %v788, %v795
        %v800 = vmul.f32 %v790, %v797
        %v801 = vsub.f32 %v799, %v800
        %v802 = vmul.f32 %v788, %v796
        %v803 = vmul.f32 %v790, %v798
        %v804 = vsub.f32 %v802, %v803
        %v805 = vmul.f32 %v790, %v795
        %v806 = vmul.f32 %v788, %v797
        %v807 = vadd.f32 %v805, %v806
        %v808 = vmul.f32 %v790, %v796
        %v809 = vmul.f32 %v788, %v798
        %v810 = vadd.f32 %v808, %v809
        %811 = vst [vmem:[%s791] sm:$0xff] %v801
        %812 = vst [vmem:[%s792] sm:$0xff] %v804
        %813 = vst [vmem:[%s793] sm:$0xff] %v807
        %814 = vst [vmem:[%s794] sm:$0xff] %v810
        %s815 = smov [#allocation8]
        %s816 = smov [#allocation12]
        %v817 = vld [vmem:[%s815] ss:$0 sm:$0xff]
        %s819 = scalar_lea.vmem %s815, 4294967295
        %v820 = vld [vmem:[%s819] sm:$0xfe]
        %v821 = vlaneseq
        %v822 = vshrl.u32 %v821, 7
        %vm823 = vcmp.eq.s32.totalorder %v822, 0
        %v824 = vsel %vm823, %v817, %v820
        %s825 = scalar_lea.vmem %s815, 7
        %v826 = vld [vmem:[%s825] ss:$0 sm:$0xff]
        %827 = vst [vmem:[%s815] sm:$0xff] %v824
        %v828 = vld [vmem:[%s816] ss:$0 sm:$0xff]
        %s829 = scalar_lea.vmem %s815, 1
        %830 = vst [vmem:[%s829] sm:$0x1] %v828
        %s831 = scalar_lea.vmem %s816, 1
        %v832 = vld [vmem:[%s831] sm:$0x7f]
        %v833 = vlaneseq
        %v834 = vshrl.u32 %v833, 7
        %vm835 = vcmp.eq.s32.totalorder %v834, 7
        %v836 = vsel %vm835, %v826, %v832
        %v837 = vld [vmem:[%s816] ss:$0 sm:$0xff]
        %838 = vst [vmem:[%s816] sm:$0xff] %v836
        %s839 = smov [#allocation10]
        %s840 = smov [#allocation13]
        %v841 = vld [vmem:[%s839] ss:$0 sm:$0xff]
        %s843 = scalar_lea.vmem %s839, 4294967295
        %v844 = vld [vmem:[%s843] sm:$0xfe]
        %v845 = vlaneseq
        %v846 = vshrl.u32 %v845, 7
        %vm847 = vcmp.eq.s32.totalorder %v846, 0
        %v848 = vsel %vm847, %v841, %v844
        %s849 = scalar_lea.vmem %s839, 7
        %v850 = vld [vmem:[%s849] ss:$0 sm:$0xff]
        %851 = vst [vmem:[%s839] sm:$0xff] %v848
        %v852 = vld [vmem:[%s840] ss:$0 sm:$0xff]
        %s853 = scalar_lea.vmem %s839, 1
        %854 = vst [vmem:[%s853] sm:$0x1] %v852
        %s855 = scalar_lea.vmem %s840, 1
        %v856 = vld [vmem:[%s855] sm:$0x7f]
        %v857 = vlaneseq
        %v858 = vshrl.u32 %v857, 7
        %vm859 = vcmp.eq.s32.totalorder %v858, 7
        %v860 = vsel %vm859, %v850, %v856
        %v861 = vld [vmem:[%s840] ss:$0 sm:$0xff]
        %862 = vst [vmem:[%s840] sm:$0xff] %v860
      $region101: #{custom-call.5} parent=93 // loop_footer
        %s383 = sadd.s32 1, %s379
      $region102: #{custom-call.5} parent=93 // loop_footer_branch
        %378 = sbr.rel target = $region98
      $region103: #{custom-call.5} parent=93 // loop_exit
        _
      %s863 = sadd.s32 %s281, 1
    $region94: #{custom-call.5} parent=1 // loop_footer
      _
    $region95: #{custom-call.5} parent=1 // loop_footer_branch
      %280 = sbr.rel target = $region91
    $region96: #{custom-call.5} parent=1 // loop_exit
      _
    %s866 = smov [#allocation15]
    %s867 = smov [#allocation4]
    %v868 = vlaneseq
    %v869 = vand.u32 %v868, 127
    %v870 = vmov %v869
    %v871 = vlaneseq
    %v872 = vshrl.u32 %v871, 7
    %v873 = vmov %v872
    %v874 = vld [vmem:[%s866] sm:$0xff]
    %vm877 = vcmp.eq.s32.totalorder %v873, %v870
    %v878 = vsel %vm877, %v874, 0.0
    %v879 = vrot.slane %v878, 4
    %v880 = vadd.f32 %v878, %v879
    %v881 = vrot.slane %v880, 2
    %v882 = vadd.f32 %v880, %v881
    %v883 = vrot.slane %v882, 1
    %v884 = vadd.f32 %v882, %v883
    %885 = vst [vmem:[%s867] sm:$0x1] %v884
    %s886 = smov [#allocation18]
    %s887 = smov [#allocation6]
    %v888 = vlaneseq
    %v889 = vand.u32 %v888, 127
    %v890 = vmov %v889
    %v891 = vlaneseq
    %v892 = vshrl.u32 %v891, 7
    %v893 = vmov %v892
    %v894 = vld [vmem:[%s886] sm:$0xff]
    %vm897 = vcmp.eq.s32.totalorder %v893, %v890
    %v898 = vsel %vm897, %v894, 0.0
    %v899 = vrot.slane %v898, 4
    %v900 = vadd.f32 %v898, %v899
    %v901 = vrot.slane %v900, 2
    %v902 = vadd.f32 %v900, %v901
    %v903 = vrot.slane %v902, 1
    %v904 = vadd.f32 %v902, %v903
    %905 = vst [vmem:[%s887] sm:$0x1] %v904
    %s907 = ssub.s32 2, 1
    %v908 = vld [vmem:[#allocation4] sm:%s907]
    %s910 = ssub.s32 2, 1
    %911 = vst [vmem:[#allocation5] sm:%s910] %v908
    %s913 = ssub.s32 2, 1
    %v914 = vld [vmem:[#allocation6] sm:%s913]
    %s916 = ssub.s32 2, 1
    %917 = vst [vmem:[#allocation7] sm:%s916] %v914
    // Predicated region
    $region104: #{custom-call.5} parent=1 // pred_check
      _
    $region105: #{custom-call.5} parent=1 // pred_check_branch
      %919 = sbr.rel (0) target = $region107
    $region106: #{custom-call.5} parent=1 // pred_region
      // Predicated region
      $region108: #{custom-call.5} parent=106 // pred_check
        _
      $region109: #{custom-call.5} parent=106 // pred_check_branch
        %921 = sbr.rel (0) target = $region111
      $region110: #{custom-call.5} parent=106 // pred_region
        %p923 = scmp.gt.s32.totalorder 0, 0
        // Predicated region
        $region112: #{custom-call.5} parent=110 // pred_check
          %p924 = pneg %p923
        $region113: #{custom-call.5} parent=110 // pred_check_branch
          %926 = sbr.rel (%p924) target = $region115
        $region114: #{custom-call.5} parent=110 // pred_region
          %s927 = ssub.s32 0, 1
          %s928 = smul.u32 %s927, 8
          %s929 = scalar_lea.vmem [#allocation5], %s928
          %v930 = vld [vmem:[#allocation5] sm:$0xff]
          // While loop
          $region116: #{custom-call.5} parent=114 // loop_pre_header
            _
          $region117: #{custom-call.5} parent=114 // loop_header
            %s931 = sphi [#allocation5], %s953
            %s932 = sphi %s4, %s954
            %v933 = vphi %v930, %v955
            %s934 = ssub.s32 %s929, 64
            %p935 = scmp.gt.s32.totalorder %s931, %s934
          $region118: #{custom-call.5} parent=114 // loop_header_branch
            %937 = sbr.rel (%p935) target = $region122
          $region119: #{custom-call.5} parent=114 // loop_body
            %938 = vst [vmem:[%s932] sm:$0xff] %v933
            %v939 = vld [vmem:[%s931 + $0x8] sm:$0xff]
            %940 = vst [vmem:[%s932 + $0x8] sm:$0xff] %v939
            %v941 = vld [vmem:[%s931 + $0x10] sm:$0xff]
            %942 = vst [vmem:[%s932 + $0x10] sm:$0xff] %v941
            %v943 = vld [vmem:[%s931 + $0x18] sm:$0xff]
            %944 = vst [vmem:[%s932 + $0x18] sm:$0xff] %v943
            %v945 = vld [vmem:[%s931 + $0x20] sm:$0xff]
            %946 = vst [vmem:[%s932 + $0x20] sm:$0xff] %v945
            %v947 = vld [vmem:[%s931 + $0x28] sm:$0xff]
            %948 = vst [vmem:[%s932 + $0x28] sm:$0xff] %v947
            %v949 = vld [vmem:[%s931 + $0x30] sm:$0xff]
            %950 = vst [vmem:[%s932 + $0x30] sm:$0xff] %v949
            %v951 = vld [vmem:[%s931 + $0x38] sm:$0xff]
            %952 = vst [vmem:[%s932 + $0x38] sm:$0xff] %v951
          $region120: #{custom-call.5} parent=114 // loop_footer
            %s953 = scalar_lea.vmem %s931, 64
            %s954 = scalar_lea.vmem %s932, 64
            %v955 = vld [vmem:[%s931 + $0x40] sm:$0xff]
          $region121: #{custom-call.5} parent=114 // loop_footer_branch
            %956 = sbr.rel target = $region117
          $region122: #{custom-call.5} parent=114 // loop_exit
            _
          // While loop
          $region123: #{custom-call.5} parent=114 // loop_pre_header
            _
          $region124: #{custom-call.5} parent=114 // loop_header
            %s957 = sphi %s931, %s965
            %s958 = sphi %s932, %s966
            %v959 = vphi %v933, %v959
            %p960 = scmp.gt.s32.totalorder %s957, %s929
          $region125: #{custom-call.5} parent=114 // loop_header_branch
            %962 = sbr.rel (%p960) target = $region129
          $region126: #{custom-call.5} parent=114 // loop_body
            %v963 = vld [vmem:[%s957] sm:$0xff]
            %964 = vst [vmem:[%s958] sm:$0xff] %v963
          $region127: #{custom-call.5} parent=114 // loop_footer
            %s965 = scalar_lea.vmem %s957, 8
            %s966 = scalar_lea.vmem %s958, 8
          $region128: #{custom-call.5} parent=114 // loop_footer_branch
            %967 = sbr.rel target = $region124
          $region129: #{custom-call.5} parent=114 // loop_exit
            _
        $region115: #{custom-call.5} parent=110 // pred_fallthru
          _
        %s969 = ssub.s32 2, 1
        %s970 = smul.u32 0, 8
        %s971 = scalar_lea.vmem %s4, %s970
        %s972 = smul.u32 0, 8
        %s973 = scalar_lea.vmem [#allocation5], %s972
        %v974 = vld [vmem:[%s973] sm:%s969]
        %975 = vst [vmem:[%s971] sm:%s969] %v974
      $region111: #{custom-call.5} parent=106 // pred_fallthru
        _
    $region107: #{custom-call.5} parent=1 // pred_fallthru
      _
    // Predicated region
    $region130: #{custom-call.5} parent=1 // pred_check
      _
    $region131: #{custom-call.5} parent=1 // pred_check_branch
      %977 = sbr.rel (0) target = $region133
    $region132: #{custom-call.5} parent=1 // pred_region
      // Predicated region
      $region134: #{custom-call.5} parent=132 // pred_check
        _
      $region135: #{custom-call.5} parent=132 // pred_check_branch
        %979 = sbr.rel (0) target = $region137
      $region136: #{custom-call.5} parent=132 // pred_region
        %p981 = scmp.gt.s32.totalorder 0, 0
        // Predicated region
        $region138: #{custom-call.5} parent=136 // pred_check
          %p982 = pneg %p981
        $region139: #{custom-call.5} parent=136 // pred_check_branch
          %984 = sbr.rel (%p982) target = $region141
        $region140: #{custom-call.5} parent=136 // pred_region
          %s985 = ssub.s32 0, 1
          %s986 = smul.u32 %s985, 8
          %s987 = scalar_lea.vmem [#allocation7], %s986
          %v988 = vld [vmem:[#allocation7] sm:$0xff]
          // While loop
          $region142: #{custom-call.5} parent=140 // loop_pre_header
            _
          $region143: #{custom-call.5} parent=140 // loop_header
            %s989 = sphi [#allocation7], %s1011
            %s990 = sphi %s5, %s1012
            %v991 = vphi %v988, %v1013
            %s992 = ssub.s32 %s987, 64
            %p993 = scmp.gt.s32.totalorder %s989, %s992
          $region144: #{custom-call.5} parent=140 // loop_header_branch
            %995 = sbr.rel (%p993) target = $region148
          $region145: #{custom-call.5} parent=140 // loop_body
            %996 = vst [vmem:[%s990] sm:$0xff] %v991
            %v997 = vld [vmem:[%s989 + $0x8] sm:$0xff]
            %998 = vst [vmem:[%s990 + $0x8] sm:$0xff] %v997
            %v999 = vld [vmem:[%s989 + $0x10] sm:$0xff]
            %1000 = vst [vmem:[%s990 + $0x10] sm:$0xff] %v999
            %v1001 = vld [vmem:[%s989 + $0x18] sm:$0xff]
            %1002 = vst [vmem:[%s990 + $0x18] sm:$0xff] %v1001
            %v1003 = vld [vmem:[%s989 + $0x20] sm:$0xff]
            %1004 = vst [vmem:[%s990 + $0x20] sm:$0xff] %v1003
            %v1005 = vld [vmem:[%s989 + $0x28] sm:$0xff]
            %1006 = vst [vmem:[%s990 + $0x28] sm:$0xff] %v1005
            %v1007 = vld [vmem:[%s989 + $0x30] sm:$0xff]
            %1008 = vst [vmem:[%s990 + $0x30] sm:$0xff] %v1007
            %v1009 = vld [vmem:[%s989 + $0x38] sm:$0xff]
            %1010 = vst [vmem:[%s990 + $0x38] sm:$0xff] %v1009
          $region146: #{custom-call.5} parent=140 // loop_footer
            %s1011 = scalar_lea.vmem %s989, 64
            %s1012 = scalar_lea.vmem %s990, 64
            %v1013 = vld [vmem:[%s989 + $0x40] sm:$0xff]
          $region147: #{custom-call.5} parent=140 // loop_footer_branch
            %1014 = sbr.rel target = $region143
          $region148: #{custom-call.5} parent=140 // loop_exit
            _
          // While loop
          $region149: #{custom-call.5} parent=140 // loop_pre_header
            _
          $region150: #{custom-call.5} parent=140 // loop_header
            %s1015 = sphi %s989, %s1023
            %s1016 = sphi %s990, %s1024
            %v1017 = vphi %v991, %v1017
            %p1018 = scmp.gt.s32.totalorder %s1015, %s987
          $region151: #{custom-call.5} parent=140 // loop_header_branch
            %1020 = sbr.rel (%p1018) target = $region155
          $region152: #{custom-call.5} parent=140 // loop_body
            %v1021 = vld [vmem:[%s1015] sm:$0xff]
            %1022 = vst [vmem:[%s1016] sm:$0xff] %v1021
          $region153: #{custom-call.5} parent=140 // loop_footer
            %s1023 = scalar_lea.vmem %s1015, 8
            %s1024 = scalar_lea.vmem %s1016, 8
          $region154: #{custom-call.5} parent=140 // loop_footer_branch
            %1025 = sbr.rel target = $region150
          $region155: #{custom-call.5} parent=140 // loop_exit
            _
        $region141: #{custom-call.5} parent=136 // pred_fallthru
          _
        %s1027 = ssub.s32 2, 1
        %s1028 = smul.u32 0, 8
        %s1029 = scalar_lea.vmem %s5, %s1028
        %s1030 = smul.u32 0, 8
        %s1031 = scalar_lea.vmem [#allocation7], %s1030
        %v1032 = vld [vmem:[%s1031] sm:%s1027]
        %1033 = vst [vmem:[%s1029] sm:%s1027] %v1032
      $region137: #{custom-call.5} parent=132 // pred_fallthru
        _
    $region133: #{custom-call.5} parent=1 // pred_fallthru
      _
    %1035 = vsyncadd [#allocation9], 0
    %s1037 = sshll.u32 [#allocation8], 4
    %s1038 = int_to_ptr.vmem [resolvable:$true] %s1037
    %s1039 = sshll.u32 %s6, 4
    %s1040 = int_to_ptr.hbm [resolvable:$true] %s1039
    %1042 = dma.vmem_to_hbm [thread:$0]  %s1038, 128, %s1040, [#allocation9]
    %1044 = vsyncadd [#allocation11], 0
    %s1046 = sshll.u32 [#allocation10], 4
    %s1047 = int_to_ptr.vmem [resolvable:$true] %s1046
    %s1048 = sshll.u32 %s7, 4
    %s1049 = int_to_ptr.hbm [resolvable:$true] %s1048
    %1051 = dma.vmem_to_hbm [thread:$0]  %s1047, 128, %s1049, [#allocation11]
    %1053 = vsyncadd [#allocation11], 0
    %s1055 = sshll.u32 [#allocation12], 4
    %s1056 = int_to_ptr.vmem [resolvable:$true] %s1055
    %s1057 = sshll.u32 %s8, 4
    %s1058 = int_to_ptr.hbm [resolvable:$true] %s1057
    %1060 = dma.vmem_to_hbm [thread:$0]  %s1056, 128, %s1058, [#allocation11]
    %1062 = vsyncadd [#allocation14], 0
    %s1064 = sshll.u32 [#allocation13], 4
    %s1065 = int_to_ptr.vmem [resolvable:$true] %s1064
    %s1066 = sshll.u32 %s9, 4
    %s1067 = int_to_ptr.hbm [resolvable:$true] %s1066
    %1069 = dma.vmem_to_hbm [thread:$0]  %s1065, 128, %s1067, [#allocation14]
    // Predicated region
    $region156: #{custom-call.5} parent=1 // pred_check
      _
    $region157: #{custom-call.5} parent=1 // pred_check_branch
      %1071 = sbr.rel (0) target = $region159
    $region158: #{custom-call.5} parent=1 // pred_region
      _
    $region159: #{custom-call.5} parent=1 // pred_fallthru
      _
    // Predicated region
    $region160: #{custom-call.5} parent=1 // pred_check
      _
    $region161: #{custom-call.5} parent=1 // pred_check_branch
      %1073 = sbr.rel (0) target = $region163
    $region162: #{custom-call.5} parent=1 // pred_region
      _
    $region163: #{custom-call.5} parent=1 // pred_fallthru
      _
    %1075 = dma.done [#allocation9], 128
    %1077 = dma.done [#allocation11], 128
    %1079 = dma.done [#allocation11], 128
    %1081 = dma.done [#allocation14], 128
    %1082 = vsyncpa [#allocation9], 1
    %1083 = vsyncpa [#allocation11], 1
    %1084 = vsyncpa [#allocation14], 1

// kernel: _lambda_.2
$region0: #{_lambda_.2}
  #allocation0 [shape = 'u32[]', space=smem, size = 0x4, offset = 0x4, fixed_abs, tag = 'smem constant byte address 0x4 - core index']
  #allocation1 [shape = 'u32[72,128]{1,0:T(1,128)}', space=vmem, size = 0x9000, scoped, tag = 'internal scratch']
  %s0 = inlined_call_operand.vmem [shape: f32[16,16], index: 0, kind: input, shape index: {}, may-alias: {0,2}]
  %s1 = inlined_call_operand.vmem [shape: f32[16,16], index: 1, kind: input, shape index: {}, may-alias: {1,3}]
  %s2 = inlined_call_operand.vmem [shape: f32[16,16], index: 2, kind: output, shape index: {0}, may-alias: {0,2}]
  %s3 = inlined_call_operand.vmem [shape: f32[16,16], index: 3, kind: output, shape index: {1}, may-alias: {1,3}]
  %4 = xla_tuple %s2, %s3
  %s5 = sld [smem:[#allocation0]]
  $region26: #{_lambda_.2} parent=0
    _
  %s7 = ssub.s32 1, %s5
  %s8 = scalar_select 0, %s7, %s5
  // Predicated region
  $region2: #{_lambda_.2} parent=0 // pred_check
    _
  $region3: #{_lambda_.2} parent=0 // pred_check_branch
    %10 = sbr.rel (0) target = $region5
  $region4: #{_lambda_.2} parent=0 // pred_region
    _
  $region5: #{_lambda_.2} parent=0 // pred_fallthru
    _
  // Predicated region
  $region6: #{_lambda_.2} parent=0 // pred_check
    _
  $region7: #{_lambda_.2} parent=0 // pred_check_branch
    %12 = sbr.rel (0) target = $region9
  $region8: #{_lambda_.2} parent=0 // pred_region
    _
  $region9: #{_lambda_.2} parent=0 // pred_fallthru
    _
  %v13 = vld [vmem:[%s0] sm:$0xff]
  %v14 = vld [vmem:[%s0 + $0x8] sm:$0xff]
  %v15 = vadd.f32 %v13, 1.0
  %v16 = vadd.f32 %v14, 1.0
  %vm17 = vcmask 130048
  %18 = vst.msk [vmem:[%s2] sm:$0xff] %vm17, %v15
  %19 = vst.msk [vmem:[%s2 + $0x8] sm:$0xff] %vm17, %v16
  %v20 = vld [vmem:[%s1] sm:$0xff]
  %v21 = vld [vmem:[%s1 + $0x8] sm:$0xff]
  %v22 = vadd.f32 %v20, 1.0
  %v23 = vadd.f32 %v21, 1.0
  %24 = vst.msk [vmem:[%s3] sm:$0xff] %vm17, %v22
  %25 = vst.msk [vmem:[%s3 + $0x8] sm:$0xff] %vm17, %v23
  // Predicated region
  $region10: #{_lambda_.2} parent=0 // pred_check
    _
  $region11: #{_lambda_.2} parent=0 // pred_check_branch
    %27 = sbr.rel (0) target = $region13
  $region12: #{_lambda_.2} parent=0 // pred_region
    _
  $region13: #{_lambda_.2} parent=0 // pred_fallthru
    _
  // Predicated region
  $region14: #{_lambda_.2} parent=0 // pred_check
    _
  $region15: #{_lambda_.2} parent=0 // pred_check_branch
    %29 = sbr.rel (0) target = $region17
  $region16: #{_lambda_.2} parent=0 // pred_region
    _
  $region17: #{_lambda_.2} parent=0 // pred_fallthru
    _
  // Predicated region
  $region18: #{_lambda_.2} parent=0 // pred_check
    _
  $region19: #{_lambda_.2} parent=0 // pred_check_branch
    %31 = sbr.rel (0) target = $region21
  $region20: #{_lambda_.2} parent=0 // pred_region
    _
  $region21: #{_lambda_.2} parent=0 // pred_fallthru
    _
  // Predicated region
  $region22: #{_lambda_.2} parent=0 // pred_check
    _
  $region23: #{_lambda_.2} parent=0 // pred_check_branch
    %33 = sbr.rel (0) target = $region25
  $region24: #{_lambda_.2} parent=0 // pred_region
    _
  $region25: #{_lambda_.2} parent=0 // pred_fallthru
    _

// kernel: _lambda_.3
$region0: #{_lambda_.3}
  #allocation0 [shape = 'u32[]', space=smem, size = 0x4, offset = 0x4, fixed_abs, tag = 'smem constant byte address 0x4 - core index']
  #allocation1 [shape = 'u32[72,128]{1,0:T(1,128)}', space=vmem, size = 0x9000, scoped, tag = 'internal scratch']
  %s0 = inlined_call_operand.vmem [shape: f32[1,16], index: 0, kind: input, shape index: {}]
  %s1 = inlined_call_operand.vmem [shape: f32[1,16], index: 1, kind: input, shape index: {}]
  %s2 = inlined_call_operand.hbm [shape: f32[1,1], index: 2, kind: output, shape index: {}]
  %s3 = sld [smem:[#allocation0]]
  $region18: #{_lambda_.3} parent=0
    _
  %s5 = ssub.s32 1, %s3
  %s6 = scalar_select 0, %s5, %s3
  $region1: #{_lambda_.3} parent=0
    #allocation2 [shape = 'u8[512]{0}', space=smem, size = 0x200, scoped, tag = 'output window, operand 0, single buffered']
    #allocation3 [shape = 's32[1]{0}', space=sflag, size = 0x4, scoped, tag = 'scoped memory for _lambda_.3']
    %7 = vsyncpa [#allocation3], 0
    // Predicated region
    $region2: #{_lambda_.3} parent=1 // pred_check
      _
    $region3: #{_lambda_.3} parent=1 // pred_check_branch
      %9 = sbr.rel (0) target = $region5
    $region4: #{_lambda_.3} parent=1 // pred_region
      _
    $region5: #{_lambda_.3} parent=1 // pred_fallthru
      _
    // Predicated region
    $region6: #{_lambda_.3} parent=1 // pred_check
      _
    $region7: #{_lambda_.3} parent=1 // pred_check_branch
      %11 = sbr.rel (0) target = $region9
    $region8: #{_lambda_.3} parent=1 // pred_region
      _
    $region9: #{_lambda_.3} parent=1 // pred_fallthru
      _
    %v12 = vld [vmem:[%s0] sm:$0x1]
    %v13 = vld [vmem:[%s1] sm:$0x1]
    %v14 = vmul.f32 %v12, %v13
    %vm15 = vcmask 122880
    %v16 = vsel %vm15, %v14, 0.0
    %17 = vadd.xlane.f32.xlu0 %v16
    %v18 = vpop.xlane.xlu0 %17
    %v19 = vrot.slane %v18, 4
    %v20 = vadd.f32 %v18, %v19
    %v21 = vrot.slane %v20, 2
    %v22 = vadd.f32 %v20, %v21
    %v23 = vrot.slane %v22, 1
    %v24 = vadd.f32 %v22, %v23
    %s25 = vtos %v24
    %v26 = vrcp.pop 240.0
    %v27 = vmul.f32 240.0, %v26
    %v28 = vsub.f32 1.0, %v27
    %v29 = vmul.f32 %v26, %v28
    %v30 = vadd.f32 %v26, %v29
    %vm31 = vweird.f32 %v26
    %v32 = vsel %vm31, %v26, %v30
    %s33 = vtos %v32
    %s34 = smul.f32 %s25, %s33
    %s35 = scalar_lea.smem [#allocation2], 0
    %36 = sst [smem:[%s35]] %s34
    // Predicated region
    $region10: #{_lambda_.3} parent=1 // pred_check
      _
    $region11: #{_lambda_.3} parent=1 // pred_check_branch
      %38 = sbr.rel (0) target = $region13
    $region12: #{_lambda_.3} parent=1 // pred_region
      %40 = vsyncadd [#allocation3], 0
      %s42 = sshll.u32 %s2, 4
      %s43 = int_to_ptr.hbm [resolvable:$true] %s42
      %45 = dma.smem_to_hbm [#allocation2], 16, %s43, [#allocation3]
    $region13: #{_lambda_.3} parent=1 // pred_fallthru
      _
    // Predicated region
    $region14: #{_lambda_.3} parent=1 // pred_check
      _
    $region15: #{_lambda_.3} parent=1 // pred_check_branch
      %47 = sbr.rel (0) target = $region17
    $region16: #{_lambda_.3} parent=1 // pred_region
      %49 = dma.done [#allocation3], 16
    $region17: #{_lambda_.3} parent=1 // pred_fallthru
      _
    %50 = sfence
    %51 = vsyncpa [#allocation3], 1

</llo_original>
